<compile_context>
chip_gen: v6e
topology: v6e:2x2x1
jax: 0.10.0
libtpu: 0.0.40
codegen_flags: <defaults>
</compile_context>

<pallas_src>
import math

import jax
import jax.numpy as jnp
from jax.experimental import pallas as pl
from jax.experimental.pallas import tpu as pltpu


def _attention_kernel(hq_ref, hkv_ref, mask_ref,
                      wq_ref, bq_ref, wk_ref, bk_ref,
                      wv_ref, bv_ref, wo_ref, bo_ref,
                      o_ref, acc_ref):
    # Block shapes per grid step (b, h):
    #   hq_ref:  (1, Sq, dm) bf16      hkv_ref: (1, Skv, dm) bf16
    #   mask_ref:(1, Sq, Skv) int8
    #   wq/wk/wv_ref: (1, dm, D) bf16  bq/bk/bv_ref: (1, 1, D) f32
    #   wo_ref:  (1, D, dm) bf16       bo_ref: (1, dm) f32
    #   o_ref:   (1, Sq, dm) f32       acc_ref: (Sq, dm) f32 scratch
    h = pl.program_id(1)
    last_h = pl.num_programs(1) - 1

    hq = hq_ref[0]                       # (Sq,  dm) bf16
    hkv = hkv_ref[0]                     # (Skv, dm) bf16
    mask = mask_ref[0] != 0              # (Sq, Skv) bool

    # Per-head projections: x @ W_h (already [in, out], scale folded into Wq).
    q = (jnp.dot(hq, wq_ref[0], preferred_element_type=jnp.float32)
         + bq_ref[0]).astype(jnp.bfloat16)                 # (Sq,  D)
    k = (jnp.dot(hkv, wk_ref[0], preferred_element_type=jnp.float32)
         + bk_ref[0]).astype(jnp.bfloat16)                 # (Skv, D)
    v = (jnp.dot(hkv, wv_ref[0], preferred_element_type=jnp.float32)
         + bv_ref[0]).astype(jnp.bfloat16)                 # (Skv, D)

    # scores = q @ k^T via dot_general (contract last dims, no transpose).
    s = jax.lax.dot_general(q, k, (((1,), (1,)), ((), ())),
                            preferred_element_type=jnp.float32)   # (Sq, Skv)

    # Masked softmax in f32; finite sentinel instead of -inf.
    s = jnp.where(mask, s, jnp.float32(-1e30))
    m = jnp.max(s, axis=-1, keepdims=True)
    e = jnp.exp(s - m)
    denom = jnp.sum(e, axis=-1, keepdims=True)
    p = e * pl.reciprocal(denom, approx=True)
    p = jnp.where(mask, p, 0.0)          # fully-masked rows -> exact zeros

    # Attention output for this head, then its slice of the output projection.
    o_h = jnp.dot(p.astype(jnp.bfloat16), v,
                  preferred_element_type=jnp.float32)      # (Sq, D)
    part = jnp.dot(o_h.astype(jnp.bfloat16), wo_ref[0],
                   preferred_element_type=jnp.float32)     # (Sq, dm)

    @pl.when(h == 0)
    def _init():
        # Fold the output bias into the accumulator init.
        acc_ref[...] = jnp.broadcast_to(bo_ref[...], acc_ref.shape)

    acc_ref[...] += part

    @pl.when(h == last_h)
    def _finalize():
        o_ref[0] = acc_ref[...].astype(o_ref.dtype)


def attention_pallas(hidden_q, hidden_kv, mask,
                     wq, bq, wk, bk, wv, bv, wo, bo,
                     *, num_heads, dim_head):
    B, Sq, dm = hidden_q.shape
    Skv = hidden_kv.shape[1]
    H, D = num_heads, dim_head
    scale = 1.0 / math.sqrt(D)

    # ---- trace-time weight prep (XLA, outside the kernel) ----
    # torch Linear stores W as [out, in]; per-head, [in, out] layout, bf16.
    def per_head_in_out(w):              # (H*D, dm) -> (H, dm, D)
        return jnp.transpose(w.reshape(H, D, dm), (0, 2, 1))

    wq_h = per_head_in_out(wq * scale).astype(jnp.bfloat16)   # scale folded in
    wk_h = per_head_in_out(wk).astype(jnp.bfloat16)
    wv_h = per_head_in_out(wv).astype(jnp.bfloat16)
    wo_h = wo.T.reshape(H, D, dm).astype(jnp.bfloat16)         # (H, D, dm)

    bq_h = (bq * scale).reshape(H, 1, D).astype(jnp.float32)
    bk_h = bk.reshape(H, 1, D).astype(jnp.float32)
    bv_h = bv.reshape(H, 1, D).astype(jnp.float32)
    bo_2 = bo.reshape(1, dm).astype(jnp.float32)

    hq_bf = hidden_q.astype(jnp.bfloat16)
    hkv_bf = hidden_kv.astype(jnp.bfloat16)
    mask_i8 = mask.astype(jnp.int8)

    w_spec = pl.BlockSpec((1, dm, D), lambda b, h: (h, 0, 0))
    b_spec = pl.BlockSpec((1, 1, D), lambda b, h: (h, 0, 0))

    return pl.pallas_call(
        _attention_kernel,
        out_shape=jax.ShapeDtypeStruct((B, Sq, dm), jnp.float32),
        grid=(B, H),                                   # head axis = reduction
        in_specs=[
            pl.BlockSpec((1, Sq, dm), lambda b, h: (b, 0, 0)),    # hidden_q
            pl.BlockSpec((1, Skv, dm), lambda b, h: (b, 0, 0)),   # hidden_kv
            pl.BlockSpec((1, Sq, Skv), lambda b, h: (b, 0, 0)),   # mask (int8)
            w_spec, b_spec,                                       # Wq, bq
            w_spec, b_spec,                                       # Wk, bk
            w_spec, b_spec,                                       # Wv, bv
            pl.BlockSpec((1, D, dm), lambda b, h: (h, 0, 0)),     # Wo (per head)
            pl.BlockSpec((1, dm), lambda b, h: (0, 0)),           # bo
        ],
        out_specs=pl.BlockSpec((1, Sq, dm), lambda b, h: (b, 0, 0)),
        scratch_shapes=[pltpu.VMEM((Sq, dm), jnp.float32)],       # head accum
        compiler_params=pltpu.CompilerParams(
            dimension_semantics=("parallel", "arbitrary"),
            # TODO(synk): re-derive for v7x (64 MiB physical VMEM) at real
            # Sq/Skv/dm; toy shapes need only a few KiB.
            vmem_limit_bytes=32 * 1024 * 1024),
    )(hq_bf, hkv_bf, mask_i8,
      wq_h, bq_h, wk_h, bk_h, wv_h, bv_h, wo_h, bo_2)


def attention_reference(hidden_q, hidden_kv, mask,
                        wq, bq, wk, bk, wv, bv, wo, bo,
                        *, num_heads, dim_head):
    """Pure-JAX (f32) replica of the torch forward, for correctness checking."""
    B, Sq, dm = hidden_q.shape
    Skv = hidden_kv.shape[1]
    q = hidden_q @ wq.T + bq
    k = hidden_kv @ wk.T + bk
    v = hidden_kv @ wv.T + bv
    q = q.reshape(B, Sq, num_heads, dim_head).transpose(0, 2, 1, 3)
    k = k.reshape(B, Skv, num_heads, dim_head).transpose(0, 2, 1, 3)
    v = v.reshape(B, Skv, num_heads, dim_head).transpose(0, 2, 1, 3)
    score = jnp.einsum('bhqd,bhkd->bhqk', q, k) / math.sqrt(dim_head)
    m = mask[:, None, :, :]
    score = jnp.where(m, score, -jnp.inf)
    score = jax.nn.softmax(score, axis=-1)
    score = jnp.where(m, score, 0.0)
    out = jnp.einsum('bhqk,bhkd->bhqd', score, v)
    out = out.transpose(0, 2, 1, 3).reshape(B, Sq, num_heads * dim_head)
    return out @ wo.T + bo


if __name__ == "__main__":
    # Small shapes consistent with the module.
    batch, seq_q, seq_kv = 2, 8, 8
    dim_model, dim_head, num_heads = 32, 16, 4
    inner = dim_head * num_heads

    key = jax.random.PRNGKey(0)
    keys = jax.random.split(key, 12)

    hidden_q = jax.random.normal(keys[0], (batch, seq_q, dim_model), jnp.float32)
    hidden_kv = jax.random.normal(keys[1], (batch, seq_kv, dim_model), jnp.float32)
    # Mask: mostly True with some False entries (bool, [B, Sq, Skv]).
    mask = jax.random.uniform(keys[2], (batch, seq_q, seq_kv)) > 0.2

    # Deterministic torch.nn.Linear-style params: W [out, in], b [out].
    def lin_init(kw, kb, out_f, in_f):
        bound = 1.0 / math.sqrt(in_f)
        w = jax.random.uniform(kw, (out_f, in_f), jnp.float32, -bound, bound)
        b = jax.random.uniform(kb, (out_f,), jnp.float32, -bound, bound)
        return w, b

    wq, bq = lin_init(keys[3], keys[4], inner, dim_model)
    wk, bk = lin_init(keys[5], keys[6], inner, dim_model)
    wv, bv = lin_init(keys[7], keys[8], inner, dim_model)
    wo, bo = lin_init(keys[9], keys[10], dim_model, inner)

    out = attention_pallas(hidden_q, hidden_kv, mask,
                           wq, bq, wk, bk, wv, bv, wo, bo,
                           num_heads=num_heads, dim_head=dim_head)
    out = jax.block_until_ready(out)

    ref = attention_reference(hidden_q, hidden_kv, mask,
                              wq, bq, wk, bk, wv, bv, wo, bo,
                              num_heads=num_heads, dim_head=dim_head)
    assert out.shape == (batch, seq_q, dim_model)
    # Loose tolerance: kernel uses bf16 MXU inputs (f32 accumulation) and an
    # approx reciprocal in the softmax; reference is full f32.
    max_err = jnp.max(jnp.abs(out - ref))
    assert jnp.allclose(out, ref, atol=5e-2, rtol=5e-2), \
        f"max abs err {max_err}"

    print("KERNEL_OK")
</pallas_src>

<mosaic_0001>
module attributes {stable_mosaic.version = 11 : i64} {
  func.func @_attention_kernel(%arg0: i32, %arg1: i32, %arg2: memref<1x8x32xbf16, #tpu.memory_space<vmem>>, %arg3: memref<1x8x32xbf16, #tpu.memory_space<vmem>>, %arg4: memref<1x8x8xi8, #tpu.memory_space<vmem>>, %arg5: memref<1x32x16xbf16, #tpu.memory_space<vmem>>, %arg6: memref<1x1x16xf32, #tpu.memory_space<vmem>>, %arg7: memref<1x32x16xbf16, #tpu.memory_space<vmem>>, %arg8: memref<1x1x16xf32, #tpu.memory_space<vmem>>, %arg9: memref<1x32x16xbf16, #tpu.memory_space<vmem>>, %arg10: memref<1x1x16xf32, #tpu.memory_space<vmem>>, %arg11: memref<1x16x32xbf16, #tpu.memory_space<vmem>>, %arg12: memref<1x32xf32, #tpu.memory_space<vmem>>, %arg13: memref<1x8x32xf32, #tpu.memory_space<vmem>>, %arg14: memref<8x32xf32, #tpu.memory_space<vmem>>) attributes {dimension_semantics = [#tpu.dimension_semantics<parallel>, #tpu.dimension_semantics<arbitrary>], iteration_bounds = array<i64: 2, 4>, scalar_prefetch = 0 : i64, scratch_operands = 1 : i64, tpu.core_type = #tpu.core_type<tc>, window_params = [{transform_indices = @transform_0, window_bounds = array<i64: 1, 8, 32>}, {transform_indices = @transform_1, window_bounds = array<i64: 1, 8, 32>}, {transform_indices = @transform_2, window_bounds = array<i64: 1, 8, 8>}, {transform_indices = @transform_3, window_bounds = array<i64: 1, 32, 16>}, {transform_indices = @transform_4, window_bounds = array<i64: 1, 1, 16>}, {transform_indices = @transform_5, window_bounds = array<i64: 1, 32, 16>}, {transform_indices = @transform_6, window_bounds = array<i64: 1, 1, 16>}, {transform_indices = @transform_7, window_bounds = array<i64: 1, 32, 16>}, {transform_indices = @transform_8, window_bounds = array<i64: 1, 1, 16>}, {transform_indices = @transform_9, window_bounds = array<i64: 1, 16, 32>}, {pipeline_mode = #tpu.pipeline_mode<synchronous>, transform_indices = @transform_10, window_bounds = array<i64: 1, 32>}, {transform_indices = @transform_11, window_bounds = array<i64: 1, 8, 32>}]} {
    %c0 = arith.constant 0 : index
    %c0_0 = arith.constant 0 : index
    %c0_1 = arith.constant 0 : index
    %0 = vector.load %arg2[%c0, %c0_0, %c0_1] : memref<1x8x32xbf16, #tpu.memory_space<vmem>>, vector<1x8x32xbf16>
    %1 = vector.shape_cast %0 : vector<1x8x32xbf16> to vector<8x32xbf16>
    %c0_2 = arith.constant 0 : index
    %c0_3 = arith.constant 0 : index
    %c0_4 = arith.constant 0 : index
    %2 = vector.load %arg3[%c0_2, %c0_3, %c0_4] : memref<1x8x32xbf16, #tpu.memory_space<vmem>>, vector<1x8x32xbf16>
    %3 = vector.shape_cast %2 : vector<1x8x32xbf16> to vector<8x32xbf16>
    %c0_5 = arith.constant 0 : index
    %c0_6 = arith.constant 0 : index
    %c0_7 = arith.constant 0 : index
    %4 = vector.load %arg4[%c0_5, %c0_6, %c0_7] : memref<1x8x8xi8, #tpu.memory_space<vmem>>, vector<1x8x8xi8>
    %5 = vector.shape_cast %4 : vector<1x8x8xi8> to vector<8x8xi8>
    %c0_i8 = arith.constant 0 : i8
    %6 = vector.broadcast %c0_i8 : i8 to vector<8x8xi8>
    %7 = arith.cmpi ne, %5, %6 : vector<8x8xi8>
    %c0_8 = arith.constant 0 : index
    %c0_9 = arith.constant 0 : index
    %c0_10 = arith.constant 0 : index
    %8 = vector.load %arg5[%c0_8, %c0_9, %c0_10] : memref<1x32x16xbf16, #tpu.memory_space<vmem>>, vector<1x32x16xbf16>
    %9 = vector.shape_cast %8 : vector<1x32x16xbf16> to vector<32x16xbf16>
    %cst = arith.constant dense<0.000000e+00> : vector<8x16xf32>
    %10 = tpu.matmul %1, %9, %cst {dimension_numbers = #tpu.dot_dimension_numbers<[1], [0], [0], [1], [0, 0, 1, 1], [], []>} : vector<8x32xbf16>, vector<32x16xbf16>, vector<8x16xf32> -> vector<8x16xf32>
    %c0_11 = arith.constant 0 : index
    %c0_12 = arith.constant 0 : index
    %c0_13 = arith.constant 0 : index
    %11 = vector.load %arg6[%c0_11, %c0_12, %c0_13] : memref<1x1x16xf32, #tpu.memory_space<vmem>>, vector<1x1x16xf32>
    %12 = vector.shape_cast %11 : vector<1x1x16xf32> to vector<1x16xf32>
    %13 = vector.broadcast %12 : vector<1x16xf32> to vector<8x16xf32>
    %14 = arith.addf %10, %13 : vector<8x16xf32>
    %15 = arith.truncf %14 : vector<8x16xf32> to vector<8x16xbf16>
    %c0_14 = arith.constant 0 : index
    %c0_15 = arith.constant 0 : index
    %c0_16 = arith.constant 0 : index
    %16 = vector.load %arg7[%c0_14, %c0_15, %c0_16] : memref<1x32x16xbf16, #tpu.memory_space<vmem>>, vector<1x32x16xbf16>
    %17 = vector.shape_cast %16 : vector<1x32x16xbf16> to vector<32x16xbf16>
    %cst_17 = arith.constant dense<0.000000e+00> : vector<8x16xf32>
    %18 = tpu.matmul %3, %17, %cst_17 {dimension_numbers = #tpu.dot_dimension_numbers<[1], [0], [0], [1], [0, 0, 1, 1], [], []>} : vector<8x32xbf16>, vector<32x16xbf16>, vector<8x16xf32> -> vector<8x16xf32>
    %c0_18 = arith.constant 0 : index
    %c0_19 = arith.constant 0 : index
    %c0_20 = arith.constant 0 : index
    %19 = vector.load %arg8[%c0_18, %c0_19, %c0_20] : memref<1x1x16xf32, #tpu.memory_space<vmem>>, vector<1x1x16xf32>
    %20 = vector.shape_cast %19 : vector<1x1x16xf32> to vector<1x16xf32>
    %21 = vector.broadcast %20 : vector<1x16xf32> to vector<8x16xf32>
    %22 = arith.addf %18, %21 : vector<8x16xf32>
    %23 = arith.truncf %22 : vector<8x16xf32> to vector<8x16xbf16>
    %c0_21 = arith.constant 0 : index
    %c0_22 = arith.constant 0 : index
    %c0_23 = arith.constant 0 : index
    %24 = vector.load %arg9[%c0_21, %c0_22, %c0_23] : memref<1x32x16xbf16, #tpu.memory_space<vmem>>, vector<1x32x16xbf16>
    %25 = vector.shape_cast %24 : vector<1x32x16xbf16> to vector<32x16xbf16>
    %cst_24 = arith.constant dense<0.000000e+00> : vector<8x16xf32>
    %26 = tpu.matmul %3, %25, %cst_24 {dimension_numbers = #tpu.dot_dimension_numbers<[1], [0], [0], [1], [0, 0, 1, 1], [], []>} : vector<8x32xbf16>, vector<32x16xbf16>, vector<8x16xf32> -> vector<8x16xf32>
    %c0_25 = arith.constant 0 : index
    %c0_26 = arith.constant 0 : index
    %c0_27 = arith.constant 0 : index
    %27 = vector.load %arg10[%c0_25, %c0_26, %c0_27] : memref<1x1x16xf32, #tpu.memory_space<vmem>>, vector<1x1x16xf32>
    %28 = vector.shape_cast %27 : vector<1x1x16xf32> to vector<1x16xf32>
    %29 = vector.broadcast %28 : vector<1x16xf32> to vector<8x16xf32>
    %30 = arith.addf %26, %29 : vector<8x16xf32>
    %31 = arith.truncf %30 : vector<8x16xf32> to vector<8x16xbf16>
    %cst_28 = arith.constant dense<0.000000e+00> : vector<8x8xf32>
    %32 = tpu.matmul %15, %23, %cst_28 {dimension_numbers = #tpu.dot_dimension_numbers<[1], [1], [0], [0], [0, 0, 1, 0], [], []>} : vector<8x16xbf16>, vector<8x16xbf16>, vector<8x8xf32> -> vector<8x8xf32>
    %cst_29 = arith.constant -1.000000e+30 : f32
    %33 = vector.broadcast %cst_29 : f32 to vector<8x8xf32>
    %34 = arith.select %7, %32, %33 : vector<8x8xi1>, vector<8x8xf32>
    %cst_30 = arith.constant dense<0xFF800000> : vector<8xf32>
    %35 = vector.multi_reduction <maximumf>, %34, %cst_30 [1] : vector<8x8xf32> to vector<8xf32>
    %36 = vector.shape_cast %35 : vector<8xf32> to vector<8x1xf32>
    %37 = vector.broadcast %36 : vector<8x1xf32> to vector<8x8xf32>
    %38 = arith.subf %34, %37 : vector<8x8xf32>
    %39 = math.exp %38 : vector<8x8xf32>
    %cst_31 = arith.constant dense<0.000000e+00> : vector<8xf32>
    %40 = vector.multi_reduction <add>, %39, %cst_31 [1] : vector<8x8xf32> to vector<8xf32>
    %41 = vector.shape_cast %40 : vector<8xf32> to vector<8x1xf32>
    %42 = tpu.reciprocal %41 {approx = true} : vector<8x1xf32> -> vector<8x1xf32>
    %43 = vector.broadcast %42 : vector<8x1xf32> to vector<8x8xf32>
    %44 = arith.mulf %39, %43 : vector<8x8xf32>
    %cst_32 = arith.constant 0.000000e+00 : f32
    %45 = vector.broadcast %cst_32 : f32 to vector<8x8xf32>
    %46 = arith.select %7, %44, %45 : vector<8x8xi1>, vector<8x8xf32>
    %47 = arith.truncf %46 : vector<8x8xf32> to vector<8x8xbf16>
    %cst_33 = arith.constant dense<0.000000e+00> : vector<8x16xf32>
    %48 = tpu.matmul %47, %31, %cst_33 {dimension_numbers = #tpu.dot_dimension_numbers<[1], [0], [0], [1], [0, 0, 1, 1], [], []>} : vector<8x8xbf16>, vector<8x16xbf16>, vector<8x16xf32> -> vector<8x16xf32>
    %49 = arith.truncf %48 : vector<8x16xf32> to vector<8x16xbf16>
    %c0_34 = arith.constant 0 : index
    %c0_35 = arith.constant 0 : index
    %c0_36 = arith.constant 0 : index
    %50 = vector.load %arg11[%c0_34, %c0_35, %c0_36] : memref<1x16x32xbf16, #tpu.memory_space<vmem>>, vector<1x16x32xbf16>
    %51 = vector.shape_cast %50 : vector<1x16x32xbf16> to vector<16x32xbf16>
    %cst_37 = arith.constant dense<0.000000e+00> : vector<8x32xf32>
    %52 = tpu.matmul %49, %51, %cst_37 {dimension_numbers = #tpu.dot_dimension_numbers<[1], [0], [0], [1], [0, 0, 1, 1], [], []>} : vector<8x16xbf16>, vector<16x32xbf16>, vector<8x32xf32> -> vector<8x32xf32>
    %c0_i32 = arith.constant 0 : i32
    %53 = arith.cmpi eq, %arg1, %c0_i32 : i32
    %54 = arith.extui %53 : i1 to i32
    %c0_i32_38 = arith.constant 0 : i32
    %55 = arith.cmpi ne, %54, %c0_i32_38 : i32
    scf.if %55 {
      %c0_44 = arith.constant 0 : index
      %c0_45 = arith.constant 0 : index
      %62 = vector.load %arg12[%c0_44, %c0_45] : memref<1x32xf32, #tpu.memory_space<vmem>>, vector<1x32xf32>
      %63 = vector.shape_cast %62 : vector<1x32xf32> to vector<1x32xf32>
      %64 = vector.broadcast %63 : vector<1x32xf32> to vector<8x32xf32>
      %c0_46 = arith.constant 0 : index
      %c0_47 = arith.constant 0 : index
      %65 = vector.load %arg14[%c0_46, %c0_47] : memref<8x32xf32, #tpu.memory_space<vmem>>, vector<8x32xf32>
      tpu.vector_store %arg14[%c0_46, %c0_47], %64 {strides = array<i32>} : memref<8x32xf32, #tpu.memory_space<vmem>>, vector<8x32xf32>,
    } else {
    }
    %c0_39 = arith.constant 0 : index
    %c0_40 = arith.constant 0 : index
    %56 = vector.load %arg14[%c0_39, %c0_40] : memref<8x32xf32, #tpu.memory_space<vmem>>, vector<8x32xf32>
    %57 = arith.addf %56, %52 : vector<8x32xf32>
    %c0_41 = arith.constant 0 : index
    %c0_42 = arith.constant 0 : index
    %58 = vector.load %arg14[%c0_41, %c0_42] : memref<8x32xf32, #tpu.memory_space<vmem>>, vector<8x32xf32>
    tpu.vector_store %arg14[%c0_41, %c0_42], %57 {strides = array<i32>} : memref<8x32xf32, #tpu.memory_space<vmem>>, vector<8x32xf32>,
    %c3_i32 = arith.constant 3 : i32
    %59 = arith.cmpi eq, %arg1, %c3_i32 : i32
    %60 = arith.extui %59 : i1 to i32
    %c0_i32_43 = arith.constant 0 : i32
    %61 = arith.cmpi ne, %60, %c0_i32_43 : i32
    scf.if %61 {
      %c0_44 = arith.constant 0 : index
      %c0_45 = arith.constant 0 : index
      %62 = vector.load %arg14[%c0_44, %c0_45] : memref<8x32xf32, #tpu.memory_space<vmem>>, vector<8x32xf32>
      %c0_46 = arith.constant 0 : index
      %c0_47 = arith.constant 0 : index
      %c0_48 = arith.constant 0 : index
      %63 = vector.load %arg13[%c0_46, %c0_47, %c0_48] : memref<1x8x32xf32, #tpu.memory_space<vmem>>, vector<1x8x32xf32>
      %64 = vector.shape_cast %63 : vector<1x8x32xf32> to vector<8x32xf32>
      %65 = vector.shape_cast %62 : vector<8x32xf32> to vector<1x8x32xf32>
      tpu.vector_store %arg13[%c0_46, %c0_47, %c0_48], %65 {strides = array<i32>} : memref<1x8x32xf32, #tpu.memory_space<vmem>>, vector<1x8x32xf32>,
    } else {
    }
    return
  }
  func.func @transform_0(%arg0: i32, %arg1: i32) -> (i32, i32, i32) {
    %c0_i32 = arith.constant 0 : i32
    %c0_i32_0 = arith.constant 0 : i32
    %c0_i32_1 = arith.constant 0 : i32
    return %arg0, %c0_i32, %c0_i32_0 : i32, i32, i32
  }
  func.func @transform_1(%arg0: i32, %arg1: i32) -> (i32, i32, i32) {
    %c0_i32 = arith.constant 0 : i32
    %c0_i32_0 = arith.constant 0 : i32
    %c0_i32_1 = arith.constant 0 : i32
    return %arg0, %c0_i32, %c0_i32_0 : i32, i32, i32
  }
  func.func @transform_2(%arg0: i32, %arg1: i32) -> (i32, i32, i32) {
    %c0_i32 = arith.constant 0 : i32
    %c0_i32_0 = arith.constant 0 : i32
    %c0_i32_1 = arith.constant 0 : i32
    return %arg0, %c0_i32, %c0_i32_0 : i32, i32, i32
  }
  func.func @transform_3(%arg0: i32, %arg1: i32) -> (i32, i32, i32) {
    %c0_i32 = arith.constant 0 : i32
    %c0_i32_0 = arith.constant 0 : i32
    %c0_i32_1 = arith.constant 0 : i32
    return %arg1, %c0_i32, %c0_i32_0 : i32, i32, i32
  }
  func.func @transform_4(%arg0: i32, %arg1: i32) -> (i32, i32, i32) {
    %c0_i32 = arith.constant 0 : i32
    %c0_i32_0 = arith.constant 0 : i32
    %c0_i32_1 = arith.constant 0 : i32
    return %arg1, %c0_i32, %c0_i32_0 : i32, i32, i32
  }
  func.func @transform_5(%arg0: i32, %arg1: i32) -> (i32, i32, i32) {
    %c0_i32 = arith.constant 0 : i32
    %c0_i32_0 = arith.constant 0 : i32
    %c0_i32_1 = arith.constant 0 : i32
    return %arg1, %c0_i32, %c0_i32_0 : i32, i32, i32
  }
  func.func @transform_6(%arg0: i32, %arg1: i32) -> (i32, i32, i32) {
    %c0_i32 = arith.constant 0 : i32
    %c0_i32_0 = arith.constant 0 : i32
    %c0_i32_1 = arith.constant 0 : i32
    return %arg1, %c0_i32, %c0_i32_0 : i32, i32, i32
  }
  func.func @transform_7(%arg0: i32, %arg1: i32) -> (i32, i32, i32) {
    %c0_i32 = arith.constant 0 : i32
    %c0_i32_0 = arith.constant 0 : i32
    %c0_i32_1 = arith.constant 0 : i32
    return %arg1, %c0_i32, %c0_i32_0 : i32, i32, i32
  }
  func.func @transform_8(%arg0: i32, %arg1: i32) -> (i32, i32, i32) {
    %c0_i32 = arith.constant 0 : i32
    %c0_i32_0 = arith.constant 0 : i32
    %c0_i32_1 = arith.constant 0 : i32
    return %arg1, %c0_i32, %c0_i32_0 : i32, i32, i32
  }
  func.func @transform_9(%arg0: i32, %arg1: i32) -> (i32, i32, i32) {
    %c0_i32 = arith.constant 0 : i32
    %c0_i32_0 = arith.constant 0 : i32
    %c0_i32_1 = arith.constant 0 : i32
    return %arg1, %c0_i32, %c0_i32_0 : i32, i32, i32
  }
  func.func @transform_10(%arg0: i32, %arg1: i32) -> (i32, i32) {
    %c0_i32 = arith.constant 0 : i32
    %c0_i32_0 = arith.constant 0 : i32
    %c0_i32_1 = arith.constant 0 : i32
    return %c0_i32, %c0_i32_0 : i32, i32
  }
  func.func @transform_11(%arg0: i32, %arg1: i32) -> (i32, i32, i32) {
    %c0_i32 = arith.constant 0 : i32
    %c0_i32_0 = arith.constant 0 : i32
    %c0_i32_1 = arith.constant 0 : i32
    return %arg0, %c0_i32, %c0_i32_0 : i32, i32, i32
  }
}

</mosaic_0001>

<llo_original>
// kernel: tpu_custom_call.1
$region0: #{tpu_custom_call.1}
  #allocation0 [shape = 'u32[]', space=smem, size = 0x4, offset = 0x4, fixed_abs, tag = 'smem constant byte address 0x4 - core index']
  #allocation1 [shape = 'u32[144,128]{1,0:T(1,128)}', space=vmem, size = 0x12000, scoped, tag = 'internal scratch']
  #allocation2 [shape = 'f32[8,32]{1,0:T(8,128)}', space=vmem, size = 0x1000, scoped, tag = 'scratch operand']
  %s0 = inlined_call_operand.vmem [shape: bf16[2,8,32], index: 0, kind: input, shape index: {}]
  %s1 = inlined_call_operand.vmem [shape: bf16[2,8,32], index: 1, kind: input, shape index: {}]
  %s2 = inlined_call_operand.vmem [shape: s8[2,8,8], index: 2, kind: input, shape index: {}]
  %s3 = inlined_call_operand.vmem [shape: bf16[4,32,16], index: 3, kind: input, shape index: {}]
  %s4 = inlined_call_operand.vmem [shape: f32[4,1,16], index: 4, kind: input, shape index: {}]
  %s5 = inlined_call_operand.vmem [shape: bf16[4,32,16], index: 5, kind: input, shape index: {}]
  %s6 = inlined_call_operand.vmem [shape: f32[4,1,16], index: 6, kind: input, shape index: {}]
  %s7 = inlined_call_operand.vmem [shape: bf16[4,32,16], index: 7, kind: input, shape index: {}]
  %s8 = inlined_call_operand.vmem [shape: f32[4,1,16], index: 8, kind: input, shape index: {}]
  %s9 = inlined_call_operand.vmem [shape: bf16[4,16,32], index: 9, kind: input, shape index: {}]
  %s10 = inlined_call_operand.vmem [shape: f32[1,32], index: 10, kind: input, shape index: {}]
  %s11 = inlined_call_operand.hbm [shape: f32[2,8,32], index: 11, kind: output, shape index: {}]
  %s12 = sld [smem:[#allocation0]]
  $region85: #{tpu_custom_call.1} parent=0
    _
  %s14 = ssub.s32 1, %s12
  %s15 = scalar_select 0, %s14, %s12
  $region1: #{tpu_custom_call.1} parent=0
    #allocation3 [shape = 'u8[8192]{0}', space=vmem, size = 0x2000, scoped, tag = 'output window, operand 0']
    #allocation4 [shape = 's32[2]{0}', space=sflag, size = 0x8, scoped, tag = 'scoped memory for tpu_custom_call.1']
    %16 = vsyncpa [#allocation4], 0
    %s17 = scalar_lea.sflag [#allocation4], 1
    %18 = vsyncpa %s17, 0
    loop: start=0, step=1, limit=10
    $region2: #{tpu_custom_call.1} parent=1 // loop_pre_header
      _
    $region3: #{tpu_custom_call.1} parent=1 // loop_header
      %s20 = sphi 0, %s24
      %p21 = scmp.ge.s32.totalorder %s20, 10
      %s27 = sphi 0, %s39
      %s28 = sphi 0, %s35
      %s29 = sphi 0, %s27
      %s30 = sphi 0, %s28
      %s31 = sphi 0, %s29
      %s32 = sphi 0, %s30
      %s42 = sphi 0, %s44
      %s45 = sphi 0, %s42
      %s46 = sphi 0, %s45
      %s62 = sphi 0, %s46
      %s68 = sphi 0, %s70
      %s71 = sphi 0, %s68
      %s72 = sphi 0, %s71
      %s88 = sphi 0, %s72
      %s94 = sphi 0, %s96
      %s97 = sphi 0, %s94
      %s98 = sphi 0, %s97
      %s114 = sphi 0, %s98
      %s120 = sphi 0, %s122
      %s123 = sphi 0, %s120
      %s124 = sphi 0, %s123
      %s140 = sphi 0, %s124
      %s146 = sphi 0, %s148
      %s149 = sphi 0, %s146
      %s150 = sphi 0, %s149
      %s166 = sphi 0, %s150
      %s172 = sphi 0, %s174
      %s175 = sphi 0, %s172
      %s176 = sphi 0, %s175
      %s192 = sphi 0, %s176
      %s198 = sphi 0, %s200
      %s201 = sphi 0, %s198
      %s202 = sphi 0, %s201
      %s218 = sphi 0, %s202
      %s224 = sphi 0, %s226
      %s227 = sphi 0, %s224
      %s228 = sphi 0, %s227
      %s244 = sphi 0, %s228
      %s250 = sphi 0, %s252
      %s253 = sphi 0, %s250
      %s254 = sphi 0, %s253
      %s270 = sphi 0, %s254
      %s276 = sphi 0, %s278
      %s279 = sphi 0, %s276
      %s280 = sphi 0, %s279
      %s296 = sphi 0, %s280
      %s300 = sphi 0, %s300
      %s302 = sphi 0, %s300
      %s303 = sphi 0, %s302
      %s317 = sphi 0, %s303
      %s323 = sphi 0, %s325
      %s326 = sphi 0, %s323
      %s327 = sphi 0, %s326
      %s343 = sphi 0, %s327
    $region4: #{tpu_custom_call.1} parent=1 // loop_header_branch
      %23 = sbr.rel (%p21) target = $region8
    $region5: #{tpu_custom_call.1} parent=1 // loop_body
      %s25 = ssub.s32 %s20, 1
      %s26 = ssub.s32 %s20, 2
      %s33 = sadd.s32 1, %s28
      %p34 = scmp.ge.s32.totalorder %s33, 4
      %s35 = scalar_select %p34, 0, %s33
      %s36 = sadd.s32 1, %s27
      %s37 = scalar_select %p34, %s36, %s27
      %p38 = scmp.ge.s32.totalorder %s37, 2
      %s39 = scalar_select %p38, 0, %s37
      %s40 = ssub.s32 %s27, %s39
      %p41 = scmp.eq.s32.totalorder %s40, 0
      %s43 = sadd.s32 %s42, 1
      %s44 = scalar_select %p41, %s42, %s43
      %p47 = pneg %p41
      %p48 = scmp.eq.s32.totalorder %s20, 7
      %p49 = por %p47, %p48
      %p50 = scmp.ne.s32.totalorder %s42, %s45
      %p51 = scmp.eq.s32.totalorder %s20, 0
      %p52 = por %p50, %p51
      %p53 = scmp.ne.s32.totalorder %s42, %s45
      %p54 = scmp.eq.s32.totalorder %s25, 7
      %p55 = por %p53, %p54
      %p56 = scmp.ne.s32.totalorder %s45, %s46
      %p57 = scmp.eq.s32.totalorder %s25, 0
      %p58 = por %p56, %p57
      %p59 = scmp.ne.s32.totalorder %s45, %s46
      %p60 = scmp.eq.s32.totalorder %s26, 7
      %p61 = por %p59, %p60
      %p63 = scmp.ne.s32.totalorder %s46, %s62
      %p64 = scmp.eq.s32.totalorder %s26, 0
      %p65 = por %p63, %p64
      %s66 = ssub.s32 %s27, %s39
      %p67 = scmp.eq.s32.totalorder %s66, 0
      %s69 = sadd.s32 %s68, 1
      %s70 = scalar_select %p67, %s68, %s69
      %p73 = pneg %p67
      %p74 = scmp.eq.s32.totalorder %s20, 7
      %p75 = por %p73, %p74
      %p76 = scmp.ne.s32.totalorder %s68, %s71
      %p77 = scmp.eq.s32.totalorder %s20, 0
      %p78 = por %p76, %p77
      %p79 = scmp.ne.s32.totalorder %s68, %s71
      %p80 = scmp.eq.s32.totalorder %s25, 7
      %p81 = por %p79, %p80
      %p82 = scmp.ne.s32.totalorder %s71, %s72
      %p83 = scmp.eq.s32.totalorder %s25, 0
      %p84 = por %p82, %p83
      %p85 = scmp.ne.s32.totalorder %s71, %s72
      %p86 = scmp.eq.s32.totalorder %s26, 7
      %p87 = por %p85, %p86
      %p89 = scmp.ne.s32.totalorder %s72, %s88
      %p90 = scmp.eq.s32.totalorder %s26, 0
      %p91 = por %p89, %p90
      %s92 = ssub.s32 %s27, %s39
      %p93 = scmp.eq.s32.totalorder %s92, 0
      %s95 = sadd.s32 %s94, 1
      %s96 = scalar_select %p93, %s94, %s95
      %p99 = pneg %p93
      %p100 = scmp.eq.s32.totalorder %s20, 7
      %p101 = por %p99, %p100
      %p102 = scmp.ne.s32.totalorder %s94, %s97
      %p103 = scmp.eq.s32.totalorder %s20, 0
      %p104 = por %p102, %p103
      %p105 = scmp.ne.s32.totalorder %s94, %s97
      %p106 = scmp.eq.s32.totalorder %s25, 7
      %p107 = por %p105, %p106
      %p108 = scmp.ne.s32.totalorder %s97, %s98
      %p109 = scmp.eq.s32.totalorder %s25, 0
      %p110 = por %p108, %p109
      %p111 = scmp.ne.s32.totalorder %s97, %s98
      %p112 = scmp.eq.s32.totalorder %s26, 7
      %p113 = por %p111, %p112
      %p115 = scmp.ne.s32.totalorder %s98, %s114
      %p116 = scmp.eq.s32.totalorder %s26, 0
      %p117 = por %p115, %p116
      %s118 = ssub.s32 %s28, %s35
      %p119 = scmp.eq.s32.totalorder %s118, 0
      %s121 = sadd.s32 %s120, 1
      %s122 = scalar_select %p119, %s120, %s121
      %p125 = pneg %p119
      %p126 = scmp.eq.s32.totalorder %s20, 7
      %p127 = por %p125, %p126
      %p128 = scmp.ne.s32.totalorder %s120, %s123
      %p129 = scmp.eq.s32.totalorder %s20, 0
      %p130 = por %p128, %p129
      %p131 = scmp.ne.s32.totalorder %s120, %s123
      %p132 = scmp.eq.s32.totalorder %s25, 7
      %p133 = por %p131, %p132
      %p134 = scmp.ne.s32.totalorder %s123, %s124
      %p135 = scmp.eq.s32.totalorder %s25, 0
      %p136 = por %p134, %p135
      %p137 = scmp.ne.s32.totalorder %s123, %s124
      %p138 = scmp.eq.s32.totalorder %s26, 7
      %p139 = por %p137, %p138
      %p141 = scmp.ne.s32.totalorder %s124, %s140
      %p142 = scmp.eq.s32.totalorder %s26, 0
      %p143 = por %p141, %p142
      %s144 = ssub.s32 %s28, %s35
      %p145 = scmp.eq.s32.totalorder %s144, 0
      %s147 = sadd.s32 %s146, 1
      %s148 = scalar_select %p145, %s146, %s147
      %p151 = pneg %p145
      %p152 = scmp.eq.s32.totalorder %s20, 7
      %p153 = por %p151, %p152
      %p154 = scmp.ne.s32.totalorder %s146, %s149
      %p155 = scmp.eq.s32.totalorder %s20, 0
      %p156 = por %p154, %p155
      %p157 = scmp.ne.s32.totalorder %s146, %s149
      %p158 = scmp.eq.s32.totalorder %s25, 7
      %p159 = por %p157, %p158
      %p160 = scmp.ne.s32.totalorder %s149, %s150
      %p161 = scmp.eq.s32.totalorder %s25, 0
      %p162 = por %p160, %p161
      %p163 = scmp.ne.s32.totalorder %s149, %s150
      %p164 = scmp.eq.s32.totalorder %s26, 7
      %p165 = por %p163, %p164
      %p167 = scmp.ne.s32.totalorder %s150, %s166
      %p168 = scmp.eq.s32.totalorder %s26, 0
      %p169 = por %p167, %p168
      %s170 = ssub.s32 %s28, %s35
      %p171 = scmp.eq.s32.totalorder %s170, 0
      %s173 = sadd.s32 %s172, 1
      %s174 = scalar_select %p171, %s172, %s173
      %p177 = pneg %p171
      %p178 = scmp.eq.s32.totalorder %s20, 7
      %p179 = por %p177, %p178
      %p180 = scmp.ne.s32.totalorder %s172, %s175
      %p181 = scmp.eq.s32.totalorder %s20, 0
      %p182 = por %p180, %p181
      %p183 = scmp.ne.s32.totalorder %s172, %s175
      %p184 = scmp.eq.s32.totalorder %s25, 7
      %p185 = por %p183, %p184
      %p186 = scmp.ne.s32.totalorder %s175, %s176
      %p187 = scmp.eq.s32.totalorder %s25, 0
      %p188 = por %p186, %p187
      %p189 = scmp.ne.s32.totalorder %s175, %s176
      %p190 = scmp.eq.s32.totalorder %s26, 7
      %p191 = por %p189, %p190
      %p193 = scmp.ne.s32.totalorder %s176, %s192
      %p194 = scmp.eq.s32.totalorder %s26, 0
      %p195 = por %p193, %p194
      %s196 = ssub.s32 %s28, %s35
      %p197 = scmp.eq.s32.totalorder %s196, 0
      %s199 = sadd.s32 %s198, 1
      %s200 = scalar_select %p197, %s198, %s199
      %p203 = pneg %p197
      %p204 = scmp.eq.s32.totalorder %s20, 7
      %p205 = por %p203, %p204
      %p206 = scmp.ne.s32.totalorder %s198, %s201
      %p207 = scmp.eq.s32.totalorder %s20, 0
      %p208 = por %p206, %p207
      %p209 = scmp.ne.s32.totalorder %s198, %s201
      %p210 = scmp.eq.s32.totalorder %s25, 7
      %p211 = por %p209, %p210
      %p212 = scmp.ne.s32.totalorder %s201, %s202
      %p213 = scmp.eq.s32.totalorder %s25, 0
      %p214 = por %p212, %p213
      %p215 = scmp.ne.s32.totalorder %s201, %s202
      %p216 = scmp.eq.s32.totalorder %s26, 7
      %p217 = por %p215, %p216
      %p219 = scmp.ne.s32.totalorder %s202, %s218
      %p220 = scmp.eq.s32.totalorder %s26, 0
      %p221 = por %p219, %p220
      %s222 = ssub.s32 %s28, %s35
      %p223 = scmp.eq.s32.totalorder %s222, 0
      %s225 = sadd.s32 %s224, 1
      %s226 = scalar_select %p223, %s224, %s225
      %p229 = pneg %p223
      %p230 = scmp.eq.s32.totalorder %s20, 7
      %p231 = por %p229, %p230
      %p232 = scmp.ne.s32.totalorder %s224, %s227
      %p233 = scmp.eq.s32.totalorder %s20, 0
      %p234 = por %p232, %p233
      %p235 = scmp.ne.s32.totalorder %s224, %s227
      %p236 = scmp.eq.s32.totalorder %s25, 7
      %p237 = por %p235, %p236
      %p238 = scmp.ne.s32.totalorder %s227, %s228
      %p239 = scmp.eq.s32.totalorder %s25, 0
      %p240 = por %p238, %p239
      %p241 = scmp.ne.s32.totalorder %s227, %s228
      %p242 = scmp.eq.s32.totalorder %s26, 7
      %p243 = por %p241, %p242
      %p245 = scmp.ne.s32.totalorder %s228, %s244
      %p246 = scmp.eq.s32.totalorder %s26, 0
      %p247 = por %p245, %p246
      %s248 = ssub.s32 %s28, %s35
      %p249 = scmp.eq.s32.totalorder %s248, 0
      %s251 = sadd.s32 %s250, 1
      %s252 = scalar_select %p249, %s250, %s251
      %p255 = pneg %p249
      %p256 = scmp.eq.s32.totalorder %s20, 7
      %p257 = por %p255, %p256
      %p258 = scmp.ne.s32.totalorder %s250, %s253
      %p259 = scmp.eq.s32.totalorder %s20, 0
      %p260 = por %p258, %p259
      %p261 = scmp.ne.s32.totalorder %s250, %s253
      %p262 = scmp.eq.s32.totalorder %s25, 7
      %p263 = por %p261, %p262
      %p264 = scmp.ne.s32.totalorder %s253, %s254
      %p265 = scmp.eq.s32.totalorder %s25, 0
      %p266 = por %p264, %p265
      %p267 = scmp.ne.s32.totalorder %s253, %s254
      %p268 = scmp.eq.s32.totalorder %s26, 7
      %p269 = por %p267, %p268
      %p271 = scmp.ne.s32.totalorder %s254, %s270
      %p272 = scmp.eq.s32.totalorder %s26, 0
      %p273 = por %p271, %p272
      %s274 = ssub.s32 %s28, %s35
      %p275 = scmp.eq.s32.totalorder %s274, 0
      %s277 = sadd.s32 %s276, 1
      %s278 = scalar_select %p275, %s276, %s277
      %p281 = pneg %p275
      %p282 = scmp.eq.s32.totalorder %s20, 7
      %p283 = por %p281, %p282
      %p284 = scmp.ne.s32.totalorder %s276, %s279
      %p285 = scmp.eq.s32.totalorder %s20, 0
      %p286 = por %p284, %p285
      %p287 = scmp.ne.s32.totalorder %s276, %s279
      %p288 = scmp.eq.s32.totalorder %s25, 7
      %p289 = por %p287, %p288
      %p290 = scmp.ne.s32.totalorder %s279, %s280
      %p291 = scmp.eq.s32.totalorder %s25, 0
      %p292 = por %p290, %p291
      %p293 = scmp.ne.s32.totalorder %s279, %s280
      %p294 = scmp.eq.s32.totalorder %s26, 7
      %p295 = por %p293, %p294
      %p297 = scmp.ne.s32.totalorder %s280, %s296
      %p298 = scmp.eq.s32.totalorder %s26, 0
      %p299 = por %p297, %p298
      %s301 = sadd.s32 %s300, 1
      %p304 = scmp.eq.s32.totalorder %s20, 7
      %p305 = scmp.ne.s32.totalorder %s300, %s302
      %p306 = scmp.eq.s32.totalorder %s20, 0
      %p307 = por %p305, %p306
      %p308 = scmp.ne.s32.totalorder %s300, %s302
      %p309 = scmp.eq.s32.totalorder %s25, 7
      %p310 = por %p308, %p309
      %p311 = scmp.ne.s32.totalorder %s302, %s303
      %p312 = scmp.eq.s32.totalorder %s25, 0
      %p313 = por %p311, %p312
      %p314 = scmp.ne.s32.totalorder %s302, %s303
      %p315 = scmp.eq.s32.totalorder %s26, 7
      %p316 = por %p314, %p315
      %p318 = scmp.ne.s32.totalorder %s303, %s317
      %p319 = scmp.eq.s32.totalorder %s26, 0
      %p320 = por %p318, %p319
      %s321 = ssub.s32 %s27, %s39
      %p322 = scmp.eq.s32.totalorder %s321, 0
      %s324 = sadd.s32 %s323, 1
      %s325 = scalar_select %p322, %s323, %s324
      %p328 = pneg %p322
      %p329 = scmp.eq.s32.totalorder %s20, 7
      %p330 = por %p328, %p329
      %p331 = scmp.ne.s32.totalorder %s323, %s326
      %p332 = scmp.eq.s32.totalorder %s20, 0
      %p333 = por %p331, %p332
      %p334 = scmp.ne.s32.totalorder %s323, %s326
      %p335 = scmp.eq.s32.totalorder %s25, 7
      %p336 = por %p334, %p335
      %p337 = scmp.ne.s32.totalorder %s326, %s327
      %p338 = scmp.eq.s32.totalorder %s25, 0
      %p339 = por %p337, %p338
      %p340 = scmp.ne.s32.totalorder %s326, %s327
      %p341 = scmp.eq.s32.totalorder %s26, 7
      %p342 = por %p340, %p341
      %p344 = scmp.ne.s32.totalorder %s327, %s343
      %p345 = scmp.eq.s32.totalorder %s26, 0
      %p346 = por %p344, %p345
      %p347 = scmp.le.s32.totalorder 1, %s20
      %p348 = scmp.lt.s32.totalorder %s20, 9
      %p349 = pnand %p347, %p348
      %p350 = pneg %p349
      // Predicated region
      $region9: #{tpu_custom_call.1} parent=5 // pred_check
        _
      $region10: #{tpu_custom_call.1} parent=5 // pred_check_branch
        %352 = sbr.rel (%p349) target = $region12
      $region11: #{tpu_custom_call.1} parent=5 // pred_region
        %s353 = ssub.s32 %s20, 1
        // Predicated region
        $region13: #{tpu_custom_call.1} parent=11 // pred_check
          %p354 = pneg %p313
        $region14: #{tpu_custom_call.1} parent=11 // pred_check_branch
          %356 = sbr.rel (%p354) target = $region16
        $region15: #{tpu_custom_call.1} parent=11 // pred_region
          _
        $region16: #{tpu_custom_call.1} parent=11 // pred_fallthru
          _
      $region12: #{tpu_custom_call.1} parent=5 // pred_fallthru
        _
      %p357 = scmp.lt.s32.totalorder %s20, 8
      // Predicated region
      $region17: #{tpu_custom_call.1} parent=5 // pred_check
        %p358 = pneg %p357
      $region18: #{tpu_custom_call.1} parent=5 // pred_check_branch
        %360 = sbr.rel (%p358) target = $region20
      $region19: #{tpu_custom_call.1} parent=5 // pred_region
        // Predicated region
        $region21: #{tpu_custom_call.1} parent=19 // pred_check
          %p361 = pneg %p52
        $region22: #{tpu_custom_call.1} parent=19 // pred_check_branch
          %363 = sbr.rel (%p361) target = $region24
        $region23: #{tpu_custom_call.1} parent=19 // pred_region
          %p364 = scmp.lt.s32.totalorder %s27, 1
          %s365 = scalar_select %p364, %s27, 1
          %s366 = smul.addr %s365, 4
          %s367 = scalar_lea.vmem %s0, %s366
        $region24: #{tpu_custom_call.1} parent=19 // pred_fallthru
          _
        // Predicated region
        $region25: #{tpu_custom_call.1} parent=19 // pred_check
          %p368 = pneg %p78
        $region26: #{tpu_custom_call.1} parent=19 // pred_check_branch
          %370 = sbr.rel (%p368) target = $region28
        $region27: #{tpu_custom_call.1} parent=19 // pred_region
          %p371 = scmp.lt.s32.totalorder %s27, 1
          %s372 = scalar_select %p371, %s27, 1
          %s373 = smul.addr %s372, 4
          %s374 = scalar_lea.vmem %s1, %s373
        $region28: #{tpu_custom_call.1} parent=19 // pred_fallthru
          _
        // Predicated region
        $region29: #{tpu_custom_call.1} parent=19 // pred_check
          %p375 = pneg %p104
        $region30: #{tpu_custom_call.1} parent=19 // pred_check_branch
          %377 = sbr.rel (%p375) target = $region32
        $region31: #{tpu_custom_call.1} parent=19 // pred_region
          %p378 = scmp.lt.s32.totalorder %s27, 1
          %s379 = scalar_select %p378, %s27, 1
          %s380 = smul.addr %s379, 2
          %s381 = scalar_lea.vmem %s2, %s380
        $region32: #{tpu_custom_call.1} parent=19 // pred_fallthru
          _
        // Predicated region
        $region33: #{tpu_custom_call.1} parent=19 // pred_check
          %p382 = pneg %p130
        $region34: #{tpu_custom_call.1} parent=19 // pred_check_branch
          %384 = sbr.rel (%p382) target = $region36
        $region35: #{tpu_custom_call.1} parent=19 // pred_region
          %p385 = scmp.lt.s32.totalorder %s28, 3
          %s386 = scalar_select %p385, %s28, 3
          %s387 = smul.addr %s386, 4
          %s388 = smul.addr %s387, 4
          %s389 = scalar_lea.vmem %s3, %s388
        $region36: #{tpu_custom_call.1} parent=19 // pred_fallthru
          _
        // Predicated region
        $region37: #{tpu_custom_call.1} parent=19 // pred_check
          %p390 = pneg %p156
        $region38: #{tpu_custom_call.1} parent=19 // pred_check_branch
          %392 = sbr.rel (%p390) target = $region40
        $region39: #{tpu_custom_call.1} parent=19 // pred_region
          %p393 = scmp.lt.s32.totalorder %s28, 3
          %s394 = scalar_select %p393, %s28, 3
          %s395 = scalar_lea.vmem %s4, %s394
        $region40: #{tpu_custom_call.1} parent=19 // pred_fallthru
          _
        // Predicated region
        $region41: #{tpu_custom_call.1} parent=19 // pred_check
          %p396 = pneg %p182
        $region42: #{tpu_custom_call.1} parent=19 // pred_check_branch
          %398 = sbr.rel (%p396) target = $region44
        $region43: #{tpu_custom_call.1} parent=19 // pred_region
          %p399 = scmp.lt.s32.totalorder %s28, 3
          %s400 = scalar_select %p399, %s28, 3
          %s401 = smul.addr %s400, 4
          %s402 = smul.addr %s401, 4
          %s403 = scalar_lea.vmem %s5, %s402
        $region44: #{tpu_custom_call.1} parent=19 // pred_fallthru
          _
        // Predicated region
        $region45: #{tpu_custom_call.1} parent=19 // pred_check
          %p404 = pneg %p208
        $region46: #{tpu_custom_call.1} parent=19 // pred_check_branch
          %406 = sbr.rel (%p404) target = $region48
        $region47: #{tpu_custom_call.1} parent=19 // pred_region
          %p407 = scmp.lt.s32.totalorder %s28, 3
          %s408 = scalar_select %p407, %s28, 3
          %s409 = scalar_lea.vmem %s6, %s408
        $region48: #{tpu_custom_call.1} parent=19 // pred_fallthru
          _
        // Predicated region
        $region49: #{tpu_custom_call.1} parent=19 // pred_check
          %p410 = pneg %p234
        $region50: #{tpu_custom_call.1} parent=19 // pred_check_branch
          %412 = sbr.rel (%p410) target = $region52
        $region51: #{tpu_custom_call.1} parent=19 // pred_region
          %p413 = scmp.lt.s32.totalorder %s28, 3
          %s414 = scalar_select %p413, %s28, 3
          %s415 = smul.addr %s414, 4
          %s416 = smul.addr %s415, 4
          %s417 = scalar_lea.vmem %s7, %s416
        $region52: #{tpu_custom_call.1} parent=19 // pred_fallthru
          _
        // Predicated region
        $region53: #{tpu_custom_call.1} parent=19 // pred_check
          %p418 = pneg %p260
        $region54: #{tpu_custom_call.1} parent=19 // pred_check_branch
          %420 = sbr.rel (%p418) target = $region56
        $region55: #{tpu_custom_call.1} parent=19 // pred_region
          %p421 = scmp.lt.s32.totalorder %s28, 3
          %s422 = scalar_select %p421, %s28, 3
          %s423 = scalar_lea.vmem %s8, %s422
        $region56: #{tpu_custom_call.1} parent=19 // pred_fallthru
          _
        // Predicated region
        $region57: #{tpu_custom_call.1} parent=19 // pred_check
          %p424 = pneg %p286
        $region58: #{tpu_custom_call.1} parent=19 // pred_check_branch
          %426 = sbr.rel (%p424) target = $region60
        $region59: #{tpu_custom_call.1} parent=19 // pred_region
          %p427 = scmp.lt.s32.totalorder %s28, 3
          %s428 = scalar_select %p427, %s28, 3
          %s429 = smul.addr %s428, 2
          %s430 = smul.addr %s429, 4
          %s431 = scalar_lea.vmem %s9, %s430
        $region60: #{tpu_custom_call.1} parent=19 // pred_fallthru
          _
      $region20: #{tpu_custom_call.1} parent=5 // pred_fallthru
        _
      %p432 = scmp.le.s32.totalorder 1, %s20
      %p433 = scmp.lt.s32.totalorder %s20, 9
      %p434 = pnand %p432, %p433
      %p435 = pneg %p434
      // Predicated region
      $region61: #{tpu_custom_call.1} parent=5 // pred_check
        _
      $region62: #{tpu_custom_call.1} parent=5 // pred_check_branch
        %437 = sbr.rel (%p434) target = $region64
      $region63: #{tpu_custom_call.1} parent=5 // pred_region
        %s438 = ssub.s32 %s20, 1
        %p439 = scmp.lt.s32.totalorder %s29, 1
        %s440 = scalar_select %p439, %s29, 1
        %s441 = smul.addr %s440, 4
        %s442 = scalar_lea.vmem %s0, %s441
        %p443 = pneg %p58
        %p444 = pneg %p55
        %p445 = scmp.lt.s32.totalorder %s29, 1
        %s446 = scalar_select %p445, %s29, 1
        %s447 = smul.addr %s446, 4
        %s448 = scalar_lea.vmem %s1, %s447
        %p449 = pneg %p84
        %p450 = pneg %p81
        %p451 = scmp.lt.s32.totalorder %s29, 1
        %s452 = scalar_select %p451, %s29, 1
        %s453 = smul.addr %s452, 2
        %s454 = scalar_lea.vmem %s2, %s453
        %p455 = pneg %p110
        %p456 = pneg %p107
        %p457 = scmp.lt.s32.totalorder %s30, 3
        %s458 = scalar_select %p457, %s30, 3
        %s459 = smul.addr %s458, 4
        %s460 = smul.addr %s459, 4
        %s461 = scalar_lea.vmem %s3, %s460
        %p462 = pneg %p136
        %p463 = pneg %p133
        %p464 = scmp.lt.s32.totalorder %s30, 3
        %s465 = scalar_select %p464, %s30, 3
        %s466 = scalar_lea.vmem %s4, %s465
        %p467 = pneg %p162
        %p468 = pneg %p159
        %p469 = scmp.lt.s32.totalorder %s30, 3
        %s470 = scalar_select %p469, %s30, 3
        %s471 = smul.addr %s470, 4
        %s472 = smul.addr %s471, 4
        %s473 = scalar_lea.vmem %s5, %s472
        %p474 = pneg %p188
        %p475 = pneg %p185
        %p476 = scmp.lt.s32.totalorder %s30, 3
        %s477 = scalar_select %p476, %s30, 3
        %s478 = scalar_lea.vmem %s6, %s477
        %p479 = pneg %p214
        %p480 = pneg %p211
        %p481 = scmp.lt.s32.totalorder %s30, 3
        %s482 = scalar_select %p481, %s30, 3
        %s483 = smul.addr %s482, 4
        %s484 = smul.addr %s483, 4
        %s485 = scalar_lea.vmem %s7, %s484
        %p486 = pneg %p240
        %p487 = pneg %p237
        %p488 = scmp.lt.s32.totalorder %s30, 3
        %s489 = scalar_select %p488, %s30, 3
        %s490 = scalar_lea.vmem %s8, %s489
        %p491 = pneg %p266
        %p492 = pneg %p263
        %p493 = scmp.lt.s32.totalorder %s30, 3
        %s494 = scalar_select %p493, %s30, 3
        %s495 = smul.addr %s494, 2
        %s496 = smul.addr %s495, 4
        %s497 = scalar_lea.vmem %s9, %s496
        %p498 = pneg %p292
        %p499 = pneg %p289
        %p500 = pneg %p313
        %p501 = pneg %p310
        %p502 = pneg %p339
        %p503 = pneg %p336
        %s504 = sand.u32 %s326, 1
        %s505 = scalar_lea.sflag [#allocation4], %s504
        %s506 = sand.u32 %s326, 1
        %s507 = smul.addr %s506, 8
        %s508 = scalar_lea.vmem [#allocation3], %s507
        %p509 = scmp.lt.s32.totalorder %s29, 1
        %s510 = scalar_select %p509, %s29, 1
        %s511 = smul.addr %s510, 4
        %s512 = scalar_lea.vmem %s0, %s511
        %p513 = scmp.lt.s32.totalorder %s29, 1
        %s514 = scalar_select %p513, %s29, 1
        %s515 = smul.addr %s514, 4
        %s516 = scalar_lea.vmem %s1, %s515
        %p517 = scmp.lt.s32.totalorder %s29, 1
        %s518 = scalar_select %p517, %s29, 1
        %s519 = smul.addr %s518, 2
        %s520 = scalar_lea.vmem %s2, %s519
        %p521 = scmp.lt.s32.totalorder %s30, 3
        %s522 = scalar_select %p521, %s30, 3
        %s523 = smul.addr %s522, 4
        %s524 = smul.addr %s523, 4
        %s525 = scalar_lea.vmem %s3, %s524
        %p526 = scmp.lt.s32.totalorder %s30, 3
        %s527 = scalar_select %p526, %s30, 3
        %s528 = scalar_lea.vmem %s4, %s527
        %p529 = scmp.lt.s32.totalorder %s30, 3
        %s530 = scalar_select %p529, %s30, 3
        %s531 = smul.addr %s530, 4
        %s532 = smul.addr %s531, 4
        %s533 = scalar_lea.vmem %s5, %s532
        %p534 = scmp.lt.s32.totalorder %s30, 3
        %s535 = scalar_select %p534, %s30, 3
        %s536 = scalar_lea.vmem %s6, %s535
        %p537 = scmp.lt.s32.totalorder %s30, 3
        %s538 = scalar_select %p537, %s30, 3
        %s539 = smul.addr %s538, 4
        %s540 = smul.addr %s539, 4
        %s541 = scalar_lea.vmem %s7, %s540
        %p542 = scmp.lt.s32.totalorder %s30, 3
        %s543 = scalar_select %p542, %s30, 3
        %s544 = scalar_lea.vmem %s8, %s543
        %p545 = scmp.lt.s32.totalorder %s30, 3
        %s546 = scalar_select %p545, %s30, 3
        %s547 = smul.addr %s546, 2
        %s548 = smul.addr %s547, 4
        %s549 = scalar_lea.vmem %s9, %s548
        %v553 = vld [vmem:[%s512] sm:$0xf]
        %v554 = vld [vmem:[%s516] sm:$0xf]
        %v555 = vld [vmem:[%s520] sm:$0x3]
        %vm556 = vnez %v555
        %v557 = vld [vmem:[%s525] sm:$0xf]
        %v558 = vld [vmem:[%s525 + $0x4] sm:$0xf]
        %v559 = vld [vmem:[%s525 + $0x8] sm:$0xf]
        %v560 = vld [vmem:[%s525 + $0xc] sm:$0xf]
        %v561 = vld [vmem:[%s528] sm:$0x1]
        %v563 = vlaneseq
        %v564 = vshrl.u32 %v563, 7
        %v565 = vsub.s32 0, %v564
        %v566 = vrot.slane %v561, %v565
        %v572 = vunpack.c.l.b16 %v557
        %v573 = vunpack.c.l.b16 %v558
        %v574 = vunpack.c.l.b16 %v559
        %v575 = vunpack.c.l.b16 %v560
        %v576 = vpack.c.b16 %v573, %v572
        %v577 = vpack.c.b16 %v575, %v574
        %vm580 = vcmask 261120
        %v582 = vsel %vm580, %v553, 0
        %584 = vmatprep.subr.bf16.mxu0 0
        %585 = vmatpush1.bf16.msra.mxu0 0
        %586 = vmatprep.subr.bf16.mxu0 0
        %587 = vmatpush1.bf16.msra.mxu0 0
        %588 = vmatprep.subr.bf16.mxu0 0
        %589 = vmatpush1.bf16.msra.mxu0 0
        %590 = vmatprep.subr.bf16.mxu0 0
        %591 = vmatpush1.bf16.msra.mxu0 0
        %592 = vmatprep.subr.bf16.mxu0 0
        %593 = vmatpush1.bf16.msra.mxu0 0
        %594 = vmatprep.subr.bf16.mxu0 0
        %595 = vmatpush1.bf16.msra.mxu0 0
        %596 = vmatprep.subr.bf16.mxu0 0
        %597 = vmatpush1.bf16.msra.mxu0 %v577
        %598 = vmatprep.subr.bf16.mxu0 0
        %599 = vmatpush1.bf16.msra.mxu0 %v576
        %600 = vmatprep.subr.bf16.mxu0 0
        %601 = vmatpush2.bf16.msra.mxu0 0
        %602 = vmatprep.subr.bf16.mxu0 0
        %603 = vmatpush2.bf16.msra.mxu0 0
        %604 = vmatprep.subr.bf16.mxu0 0
        %605 = vmatpush2.bf16.msra.mxu0 0
        %606 = vmatprep.subr.bf16.mxu0 0
        %607 = vmatpush2.bf16.msra.mxu0 0
        %608 = vmatprep.subr.bf16.mxu0 0
        %609 = vmatpush2.bf16.msra.mxu0 0
        %610 = vmatprep.subr.bf16.mxu0 0
        %611 = vmatpush2.bf16.msra.mxu0 0
        %612 = vmatprep.subr.bf16.mxu0 0
        %613 = vmatpush2.bf16.msra.mxu0 0
        %614 = vmatprep.subr.bf16.mxu0 0
        %615 = vmatpush2.bf16.msra.mxu0 0
        %616 = vmatprep.mubr.bf16.mxu0 0
        %617 = vmatmul.mubr.bf16.gmra.mxu0 %v582
        %v618 = vpop.f32.mrf.mxu0
        %v619 = vadd.f32 %v566, %v618
        %v620 = vpop.f32.mrf.mxu0
        %v621 = vpop.f32.mrf.mxu0
        %v622 = vpop.f32.mrf.mxu0
        %623 = vdwg.mxu0
        %v624 = vpack.c.bf16 %v619, %v619
        %v625 = vld [vmem:[%s533] sm:$0xf]
        %v626 = vld [vmem:[%s533 + $0x4] sm:$0xf]
        %v627 = vld [vmem:[%s533 + $0x8] sm:$0xf]
        %v628 = vld [vmem:[%s533 + $0xc] sm:$0xf]
        %v629 = vld [vmem:[%s536] sm:$0x1]
        %v631 = vlaneseq
        %v632 = vshrl.u32 %v631, 7
        %v633 = vsub.s32 0, %v632
        %v634 = vrot.slane %v629, %v633
        %v640 = vunpack.c.l.b16 %v625
        %v641 = vunpack.c.l.b16 %v626
        %v642 = vunpack.c.l.b16 %v627
        %v643 = vunpack.c.l.b16 %v628
        %v644 = vpack.c.b16 %v641, %v640
        %v645 = vpack.c.b16 %v643, %v642
        %v649 = vsel %vm580, %v554, 0
        %651 = vmatprep.subr.bf16.mxu0 0
        %652 = vmatpush1.bf16.msra.mxu0 0
        %653 = vmatprep.subr.bf16.mxu0 0
        %654 = vmatpush1.bf16.msra.mxu0 0
        %655 = vmatprep.subr.bf16.mxu0 0
        %656 = vmatpush1.bf16.msra.mxu0 0
        %657 = vmatprep.subr.bf16.mxu0 0
        %658 = vmatpush1.bf16.msra.mxu0 0
        %659 = vmatprep.subr.bf16.mxu0 0
        %660 = vmatpush1.bf16.msra.mxu0 0
        %661 = vmatprep.subr.bf16.mxu0 0
        %662 = vmatpush1.bf16.msra.mxu0 0
        %663 = vmatprep.subr.bf16.mxu0 0
        %664 = vmatpush1.bf16.msra.mxu0 %v645
        %665 = vmatprep.subr.bf16.mxu0 0
        %666 = vmatpush1.bf16.msra.mxu0 %v644
        %667 = vmatprep.subr.bf16.mxu0 0
        %668 = vmatpush2.bf16.msra.mxu0 0
        %669 = vmatprep.subr.bf16.mxu0 0
        %670 = vmatpush2.bf16.msra.mxu0 0
        %671 = vmatprep.subr.bf16.mxu0 0
        %672 = vmatpush2.bf16.msra.mxu0 0
        %673 = vmatprep.subr.bf16.mxu0 0
        %674 = vmatpush2.bf16.msra.mxu0 0
        %675 = vmatprep.subr.bf16.mxu0 0
        %676 = vmatpush2.bf16.msra.mxu0 0
        %677 = vmatprep.subr.bf16.mxu0 0
        %678 = vmatpush2.bf16.msra.mxu0 0
        %679 = vmatprep.subr.bf16.mxu0 0
        %680 = vmatpush2.bf16.msra.mxu0 0
        %681 = vmatprep.subr.bf16.mxu0 0
        %682 = vmatpush2.bf16.msra.mxu0 0
        %683 = vmatprep.mubr.bf16.mxu0 0
        %684 = vmatmul.mubr.bf16.gmra.mxu0 %v649
        %v685 = vpop.f32.mrf.mxu0
        %v686 = vadd.f32 %v634, %v685
        %v687 = vpop.f32.mrf.mxu0
        %v688 = vpop.f32.mrf.mxu0
        %v689 = vpop.f32.mrf.mxu0
        %690 = vdwg.mxu0
        %v691 = vpack.c.bf16 %v686, %v686
        %v692 = vld [vmem:[%s541] sm:$0xf]
        %v693 = vld [vmem:[%s541 + $0x4] sm:$0xf]
        %v694 = vld [vmem:[%s541 + $0x8] sm:$0xf]
        %v695 = vld [vmem:[%s541 + $0xc] sm:$0xf]
        %v696 = vld [vmem:[%s544] sm:$0x1]
        %v698 = vlaneseq
        %v699 = vshrl.u32 %v698, 7
        %v700 = vsub.s32 0, %v699
        %v701 = vrot.slane %v696, %v700
        %v707 = vunpack.c.l.b16 %v692
        %v708 = vunpack.c.l.b16 %v693
        %v709 = vunpack.c.l.b16 %v694
        %v710 = vunpack.c.l.b16 %v695
        %v711 = vpack.c.b16 %v708, %v707
        %v712 = vpack.c.b16 %v710, %v709
        %715 = vmatprep.subr.bf16.mxu0 0
        %716 = vmatpush1.bf16.msra.mxu0 0
        %717 = vmatprep.subr.bf16.mxu0 0
        %718 = vmatpush1.bf16.msra.mxu0 0
        %719 = vmatprep.subr.bf16.mxu0 0
        %720 = vmatpush1.bf16.msra.mxu0 0
        %721 = vmatprep.subr.bf16.mxu0 0
        %722 = vmatpush1.bf16.msra.mxu0 0
        %723 = vmatprep.subr.bf16.mxu0 0
        %724 = vmatpush1.bf16.msra.mxu0 0
        %725 = vmatprep.subr.bf16.mxu0 0
        %726 = vmatpush1.bf16.msra.mxu0 0
        %727 = vmatprep.subr.bf16.mxu0 0
        %728 = vmatpush1.bf16.msra.mxu0 %v712
        %729 = vmatprep.subr.bf16.mxu0 0
        %730 = vmatpush1.bf16.msra.mxu0 %v711
        %731 = vmatprep.subr.bf16.mxu0 0
        %732 = vmatpush2.bf16.msra.mxu0 0
        %733 = vmatprep.subr.bf16.mxu0 0
        %734 = vmatpush2.bf16.msra.mxu0 0
        %735 = vmatprep.subr.bf16.mxu0 0
        %736 = vmatpush2.bf16.msra.mxu0 0
        %737 = vmatprep.subr.bf16.mxu0 0
        %738 = vmatpush2.bf16.msra.mxu0 0
        %739 = vmatprep.subr.bf16.mxu0 0
        %740 = vmatpush2.bf16.msra.mxu0 0
        %741 = vmatprep.subr.bf16.mxu0 0
        %742 = vmatpush2.bf16.msra.mxu0 0
        %743 = vmatprep.subr.bf16.mxu0 0
        %744 = vmatpush2.bf16.msra.mxu0 0
        %745 = vmatprep.subr.bf16.mxu0 0
        %746 = vmatpush2.bf16.msra.mxu0 0
        %747 = vmatprep.mubr.bf16.mxu0 0
        %748 = vmatmul.mubr.bf16.gmra.mxu0 %v649
        %v749 = vpop.f32.mrf.mxu0
        %v750 = vadd.f32 %v701, %v749
        %v751 = vpop.f32.mrf.mxu0
        %v752 = vpop.f32.mrf.mxu0
        %v753 = vpop.f32.mrf.mxu0
        %754 = vdwg.mxu0
        %v755 = vpack.c.bf16 %v750, %v750
        %vm756 = vcmask 130048
        %v758 = vsel %vm756, %v624, 0
        %v761 = vsel %vm756, %v691, 0
        %763 = vmatprep.subr.bf16.mxu0 0
        %764 = vmatpush1.bf16.xpose.msra.mxu0 0
        %765 = vmatprep.subr.bf16.mxu0 0
        %766 = vmatpush1.bf16.xpose.msra.mxu0 0
        %767 = vmatprep.subr.bf16.mxu0 0
        %768 = vmatpush1.bf16.xpose.msra.mxu0 0
        %769 = vmatprep.subr.bf16.mxu0 0
        %770 = vmatpush1.bf16.xpose.msra.mxu0 0
        %771 = vmatprep.subr.bf16.mxu0 0
        %772 = vmatpush1.bf16.xpose.msra.mxu0 0
        %773 = vmatprep.subr.bf16.mxu0 0
        %774 = vmatpush1.bf16.xpose.msra.mxu0 0
        %775 = vmatprep.subr.bf16.mxu0 0
        %776 = vmatpush1.bf16.xpose.msra.mxu0 0
        %777 = vmatprep.subr.bf16.mxu0 0
        %778 = vmatpush1.bf16.xpose.msra.mxu0 %v761
        %779 = vmatprep.subr.bf16.mxu0 0
        %780 = vmatpush2.bf16.xpose.msra.mxu0 0
        %781 = vmatprep.subr.bf16.mxu0 0
        %782 = vmatpush2.bf16.xpose.msra.mxu0 0
        %783 = vmatprep.subr.bf16.mxu0 0
        %784 = vmatpush2.bf16.xpose.msra.mxu0 0
        %785 = vmatprep.subr.bf16.mxu0 0
        %786 = vmatpush2.bf16.xpose.msra.mxu0 0
        %787 = vmatprep.subr.bf16.mxu0 0
        %788 = vmatpush2.bf16.xpose.msra.mxu0 0
        %789 = vmatprep.subr.bf16.mxu0 0
        %790 = vmatpush2.bf16.xpose.msra.mxu0 0
        %791 = vmatprep.subr.bf16.mxu0 0
        %792 = vmatpush2.bf16.xpose.msra.mxu0 0
        %793 = vmatprep.subr.bf16.mxu0 0
        %794 = vmatpush2.bf16.xpose.msra.mxu0 0
        %795 = vmatprep.mubr.bf16.mxu0 0
        %796 = vmatmul.mubr.bf16.gmra.mxu0 %v758
        %v797 = vpop.f32.mrf.mxu0
        %v798 = vadd.f32 0.0, %v797
        %v799 = vpop.f32.mrf.mxu0
        %v800 = vpop.f32.mrf.mxu0
        %v801 = vpop.f32.mrf.mxu0
        %802 = vdwg.mxu0
        %v803 = vsel %vm556, 16843009, 0
        %v804 = vunpack.c.0.s8 %v803
        %vm805 = vcmp.ne.s32.totalorder %v804, 0
        %v806 = vsel %vm805, %v798, -1e+30
        %vm807 = vcmask 64512
        %v808 = vsel %vm807, %v806, -inf
        %809 = vmax.xlane.f32.xlu0 %v808
        %v810 = vpop.xlane.xlu0 %809
        %v811 = vsub.f32 %v806, %v810
        %v812 = vmul.f32 %v811, 1.442695
        %v813 = vpow.pop %v812
        %v814 = vsel %vm807, %v813, 0.0
        %815 = vadd.xlane.f32.xlu0 %v814
        %v816 = vpop.xlane.xlu0 %815
        %v817 = vrcp.pop %v816
        %v818 = vmul.f32 %v813, %v817
        %v819 = vsel %vm805, %v818, 0.0
        %v820 = vpack.c.bf16 %v819, %v819
        %v822 = vsel %vm807, %v820, 0
        %vm824 = vcmask 1043456
        %v826 = vsel %vm824, %v755, 0
        %828 = vmatprep.subr.bf16.mxu0 0
        %829 = vmatpush1.bf16.msra.mxu0 0
        %830 = vmatprep.subr.bf16.mxu0 0
        %831 = vmatpush1.bf16.msra.mxu0 0
        %832 = vmatprep.subr.bf16.mxu0 0
        %833 = vmatpush1.bf16.msra.mxu0 0
        %834 = vmatprep.subr.bf16.mxu0 0
        %835 = vmatpush1.bf16.msra.mxu0 0
        %836 = vmatprep.subr.bf16.mxu0 0
        %837 = vmatpush1.bf16.msra.mxu0 0
        %838 = vmatprep.subr.bf16.mxu0 0
        %839 = vmatpush1.bf16.msra.mxu0 0
        %840 = vmatprep.subr.bf16.mxu0 0
        %841 = vmatpush1.bf16.msra.mxu0 0
        %842 = vmatprep.subr.bf16.mxu0 0
        %843 = vmatpush1.bf16.msra.mxu0 %v826
        %844 = vmatprep.subr.bf16.mxu0 0
        %845 = vmatpush2.bf16.msra.mxu0 0
        %846 = vmatprep.subr.bf16.mxu0 0
        %847 = vmatpush2.bf16.msra.mxu0 0
        %848 = vmatprep.subr.bf16.mxu0 0
        %849 = vmatpush2.bf16.msra.mxu0 0
        %850 = vmatprep.subr.bf16.mxu0 0
        %851 = vmatpush2.bf16.msra.mxu0 0
        %852 = vmatprep.subr.bf16.mxu0 0
        %853 = vmatpush2.bf16.msra.mxu0 0
        %854 = vmatprep.subr.bf16.mxu0 0
        %855 = vmatpush2.bf16.msra.mxu0 0
        %856 = vmatprep.subr.bf16.mxu0 0
        %857 = vmatpush2.bf16.msra.mxu0 0
        %858 = vmatprep.subr.bf16.mxu0 0
        %859 = vmatpush2.bf16.msra.mxu0 0
        %860 = vmatprep.mubr.bf16.mxu0 0
        %861 = vmatmul.mubr.bf16.gmra.mxu0 %v822
        %v862 = vpop.f32.mrf.mxu0
        %v863 = vadd.f32 0.0, %v862
        %v864 = vpop.f32.mrf.mxu0
        %v865 = vpop.f32.mrf.mxu0
        %v866 = vpop.f32.mrf.mxu0
        %867 = vdwg.mxu0
        %v868 = vpack.c.bf16 %v863, %v863
        %v869 = vld [vmem:[%s549] sm:$0xf]
        %v870 = vld [vmem:[%s549 + $0x4] sm:$0xf]
        %v873 = vunpack.c.l.b16 %v869
        %v874 = vunpack.c.l.b16 %v870
        %v875 = vpack.c.b16 %v874, %v873
        %v878 = vsel %vm756, %v868, 0
        %880 = vmatprep.subr.bf16.mxu0 0
        %881 = vmatpush1.bf16.msra.mxu0 0
        %882 = vmatprep.subr.bf16.mxu0 0
        %883 = vmatpush1.bf16.msra.mxu0 0
        %884 = vmatprep.subr.bf16.mxu0 0
        %885 = vmatpush1.bf16.msra.mxu0 0
        %886 = vmatprep.subr.bf16.mxu0 0
        %887 = vmatpush1.bf16.msra.mxu0 0
        %888 = vmatprep.subr.bf16.mxu0 0
        %889 = vmatpush1.bf16.msra.mxu0 0
        %890 = vmatprep.subr.bf16.mxu0 0
        %891 = vmatpush1.bf16.msra.mxu0 0
        %892 = vmatprep.subr.bf16.mxu0 0
        %893 = vmatpush1.bf16.msra.mxu0 0
        %894 = vmatprep.subr.bf16.mxu0 0
        %895 = vmatpush1.bf16.msra.mxu0 %v875
        %896 = vmatprep.subr.bf16.mxu0 0
        %897 = vmatpush2.bf16.msra.mxu0 0
        %898 = vmatprep.subr.bf16.mxu0 0
        %899 = vmatpush2.bf16.msra.mxu0 0
        %900 = vmatprep.subr.bf16.mxu0 0
        %901 = vmatpush2.bf16.msra.mxu0 0
        %902 = vmatprep.subr.bf16.mxu0 0
        %903 = vmatpush2.bf16.msra.mxu0 0
        %904 = vmatprep.subr.bf16.mxu0 0
        %905 = vmatpush2.bf16.msra.mxu0 0
        %906 = vmatprep.subr.bf16.mxu0 0
        %907 = vmatpush2.bf16.msra.mxu0 0
        %908 = vmatprep.subr.bf16.mxu0 0
        %909 = vmatpush2.bf16.msra.mxu0 0
        %910 = vmatprep.subr.bf16.mxu0 0
        %911 = vmatpush2.bf16.msra.mxu0 0
        %912 = vmatprep.mubr.bf16.mxu0 0
        %913 = vmatmul.mubr.bf16.gmra.mxu0 %v878
        %v914 = vpop.f32.mrf.mxu0
        %v915 = vadd.f32 0.0, %v914
        %v916 = vpop.f32.mrf.mxu0
        %v917 = vpop.f32.mrf.mxu0
        %v918 = vpop.f32.mrf.mxu0
        %919 = vdwg.mxu0
        %p920 = scmp.eq.s32.totalorder %s30, 0
        // Predicated region
        $region65: #{tpu_custom_call.1} parent=63 // pred_check
          %p921 = pneg %p920
        $region66: #{tpu_custom_call.1} parent=63 // pred_check_branch
          %923 = sbr.rel (%p921) target = $region68
        $region67: #{tpu_custom_call.1} parent=63 // pred_region
          %v924 = vld [vmem:[%s10] sm:$0x1]
          %v926 = vlaneseq
          %v927 = vshrl.u32 %v926, 7
          %v928 = vsub.s32 0, %v927
          %v929 = vrot.slane %v924, %v928
          %931 = vst.msk [vmem:[#allocation2] sm:$0xff] %vm580, %v929
        $region68: #{tpu_custom_call.1} parent=63 // pred_fallthru
          _
        %v932 = vld [vmem:[#allocation2] sm:$0xff]
        %v933 = vadd.f32 %v932, %v915
        %934 = vst.msk [vmem:[#allocation2] sm:$0xff] %vm580, %v933
        %p935 = scmp.eq.s32.totalorder %s30, 3
        // Predicated region
        $region69: #{tpu_custom_call.1} parent=63 // pred_check
          %p936 = pneg %p935
        $region70: #{tpu_custom_call.1} parent=63 // pred_check_branch
          %938 = sbr.rel (%p936) target = $region72
        $region71: #{tpu_custom_call.1} parent=63 // pred_region
          %v939 = vld [vmem:[#allocation2] sm:$0xff]
          %940 = vst.msk [vmem:[%s508] sm:$0xff] %vm580, %v939
        $region72: #{tpu_custom_call.1} parent=63 // pred_fallthru
          _
        %s941 = sand.u32 %s326, 1
        %s942 = scalar_lea.sflag [#allocation4], %s941
        %s943 = sand.u32 %s326, 1
        %s944 = smul.addr %s943, 8
        %s945 = scalar_lea.vmem [#allocation3], %s944
        // Predicated region
        $region73: #{tpu_custom_call.1} parent=63 // pred_check
          %p946 = pneg %p336
        $region74: #{tpu_custom_call.1} parent=63 // pred_check_branch
          %948 = sbr.rel (%p946) target = $region76
        $region75: #{tpu_custom_call.1} parent=63 // pred_region
          %s950 = ssub.s32 128, 128
          %951 = vsyncadd %s942, %s950
          %s952 = smul.addr %s29, 128
          %s953 = scalar_lea.hbm %s11, %s952
          %s955 = sshll.u32 %s945, 4
          %s956 = int_to_ptr.vmem [resolvable:$true] %s955
          %958 = dma.vmem_to_hbm [thread:$0]  %s956, 128, %s953, %s942
        $region76: #{tpu_custom_call.1} parent=63 // pred_fallthru
          _
      $region64: #{tpu_custom_call.1} parent=5 // pred_fallthru
        _
      %p959 = scmp.le.s32.totalorder 2, %s20
      // Predicated region
      $region77: #{tpu_custom_call.1} parent=5 // pred_check
        %p960 = pneg %p959
      $region78: #{tpu_custom_call.1} parent=5 // pred_check_branch
        %962 = sbr.rel (%p960) target = $region80
      $region79: #{tpu_custom_call.1} parent=5 // pred_region
        %s963 = ssub.s32 %s20, 2
        // Predicated region
        $region81: #{tpu_custom_call.1} parent=79 // pred_check
          %p964 = pneg %p342
        $region82: #{tpu_custom_call.1} parent=79 // pred_check_branch
          %966 = sbr.rel (%p964) target = $region84
        $region83: #{tpu_custom_call.1} parent=79 // pred_region
          %s967 = sand.u32 %s327, 1
          %s968 = scalar_lea.sflag [#allocation4], %s967
          %s969 = sand.u32 %s327, 1
          %s970 = smul.addr %s969, 8
          %s971 = scalar_lea.vmem [#allocation3], %s970
          %972 = dma.done %s968, 128
        $region84: #{tpu_custom_call.1} parent=79 // pred_fallthru
          _
      $region80: #{tpu_custom_call.1} parent=5 // pred_fallthru
        _
    $region6: #{tpu_custom_call.1} parent=1 // loop_footer
      %s24 = sadd.s32 1, %s20
    $region7: #{tpu_custom_call.1} parent=1 // loop_footer_branch
      %19 = sbr.rel target = $region3
    $region8: #{tpu_custom_call.1} parent=1 // loop_exit
      _
    %973 = vsyncpa [#allocation4], 1
    %s974 = scalar_lea.sflag [#allocation4], 1
    %975 = vsyncpa %s974, 1

</llo_original>
